<compile_context>
chip_gen: v7x
topology: tpu7x:2x2x1
jax: 0.10.0
libtpu: 0.0.40
codegen_flags: <defaults>
</compile_context>

<pallas_src>
import jax
import jax.numpy as jnp
from jax.experimental import pallas as pl
from jax.experimental.pallas import tpu as pltpu

_LANES = 128
_CHUNK_ROWS = 128                    # in-kernel accumulation chunk (rows)
_AUTO_PALLAS_MIN_ELEMS = 1 << 20     # below this, fused XLA reduction wins


def _device_kind() -> str:
    try:
        return jax.devices()[0].device_kind.lower()
    except Exception:
        return ""


def _default_num_shards(kind: str) -> int:
    # 2 TensorCores visible to one Pallas program (megacore): v7x / v4 / v5p.
    # v5e / v6e have a single TensorCore -> an outer "parallel" split buys
    # nothing there.
    if ("v7" in kind) or ("v4" in kind) or ("v5p" in kind):
        return 2
    return 1


def _default_tm_max(kind: str) -> int:
    # Rows per tile (lane width fixed at 128).  Bigger tiles amortize the
    # ~0.35 us per-grid-step overhead; bounded by per-generation VMEM:
    # v6e has 128 MiB physical VMEM; v7x only 64 MiB (32 MiB scoped default).
    if "v6" in kind:
        return 8192        # f32: 2 inputs x 2 buffers x 4 MiB = 16 MiB
    return 4096            # v5e / v7x / unknown: 8 MiB of f32 input buffers


def _sublane_pack(itemsize: int) -> int:
    # Native packed tile: (8,128) f32, (16,128) bf16/f16, (32,128) int8/fp8.
    return 8 * max(1, 4 // itemsize)


def _mse_partial_kernel(out_ref, tgt_ref, part_ref):
    """Accumulate sum((out - tgt)^2) of one (tm, 128) tile into the resident
    (8, 128) f32 output block (per-shard partial sum)."""
    t = pl.program_id(1)

    @pl.when(t == 0)
    def _init():
        part_ref[...] = jnp.zeros_like(part_ref)

    tm = out_ref.shape[0]
    chunk = _CHUNK_ROWS if tm >= _CHUNK_ROWS else tm
    n_chunks = tm // chunk

    if n_chunks == 1:
        d = out_ref[...].astype(jnp.float32) - tgt_ref[...].astype(jnp.float32)
        sq = d * d
        acc = jnp.sum(sq.reshape(tm // 8, 8, _LANES), axis=0)
    else:
        # Chunked streaming accumulation: bounds live vregs to ~2 chunks of
        # input (16 vregs each for f32) instead of tm/8 vregs of `d`/`sq`.
        def body(c, acc):
            start = pl.multiple_of(c * chunk, chunk)
            o = out_ref[pl.ds(start, chunk), :].astype(jnp.float32)
            g = tgt_ref[pl.ds(start, chunk), :].astype(jnp.float32)
            d = o - g
            sq = d * d
            return acc + jnp.sum(sq.reshape(chunk // 8, 8, _LANES), axis=0)

        acc = jax.lax.fori_loop(
            0, n_chunks, body, jnp.zeros((8, _LANES), jnp.float32), unroll=True
        )

    part_ref[...] += acc


def _mse_partial_sums(o2, t2, *, tm, num_shards, tiles_per_shard):
    in_map = lambda s, t: (s * tiles_per_shard + t, 0)
    return pl.pallas_call(
        _mse_partial_kernel,
        out_shape=jax.ShapeDtypeStruct((num_shards * 8, _LANES), jnp.float32),
        grid_spec=pltpu.PrefetchScalarGridSpec(
            num_scalar_prefetch=0,
            grid=(num_shards, tiles_per_shard),
            in_specs=[
                pl.BlockSpec((tm, _LANES), in_map),
                pl.BlockSpec((tm, _LANES), in_map),
            ],
            out_specs=pl.BlockSpec((8, _LANES), lambda s, t: (s, 0)),
        ),
        compiler_params=pltpu.CompilerParams(
            dimension_semantics=("parallel", "arbitrary"),
            vmem_limit_bytes=32 * 1024 * 1024,
        ),
    )(o2, t2)


def mse_loss(outputs, targets, *, tm_max=None, num_shards=None, use_pallas=None):
    """Scalar MSE loss; the heavy reduction runs in a tiled, pipelined Pallas
    kernel for large inputs, with small remainders handled by fused XLA ops."""
    assert outputs.shape == targets.shape, "outputs/targets shape mismatch"

    total = 1
    for s in outputs.shape:
        total *= int(s)

    def _xla_mse():
        d = outputs.astype(jnp.float32) - targets.astype(jnp.float32)
        return jnp.mean(d * d)

    if use_pallas is None:
        use_pallas = total >= _AUTO_PALLAS_MIN_ELEMS
    if not use_pallas:
        return _xla_mse()

    o_flat = outputs.reshape(-1)
    t_flat = targets.reshape(-1)
    if o_flat.dtype != t_flat.dtype or jnp.dtype(o_flat.dtype).itemsize > 4:
        o_flat = o_flat.astype(jnp.float32)
        t_flat = t_flat.astype(jnp.float32)
    itemsize = jnp.dtype(o_flat.dtype).itemsize
    pack = _sublane_pack(itemsize)

    rows = total // _LANES
    tail = total - rows * _LANES

    kind = _device_kind()
    if num_shards is None:
        num_shards = _default_num_shards(kind)
    num_shards = max(1, int(num_shards))
    if rows // num_shards < pack:
        num_shards = 1
    if tm_max is None:
        tm_max = _default_tm_max(kind)
    tm_max = max(int(tm_max), pack)

    rows_per_shard = rows // num_shards
    if rows_per_shard >= _CHUNK_ROWS:
        tm = (min(tm_max, rows_per_shard) // _CHUNK_ROWS) * _CHUNK_ROWS
        tm = max(tm, _CHUNK_ROWS)
    else:
        tm = (rows_per_shard // pack) * pack
    if tm < pack:
        # Too small to form even one native tile -> fused XLA reduction.
        return _xla_mse()

    tiles_per_shard = rows_per_shard // tm
    covered_rows = num_shards * tiles_per_shard * tm   # <= rows: all blocks in-bounds

    main = rows * _LANES
    if tail:
        # Rare case (element count not a multiple of 128): materialize the
        # 128-aligned prefix once; the <128-element tail is reduced in XLA.
        o2 = o_flat[:main].reshape(rows, _LANES)
        t2 = t_flat[:main].reshape(rows, _LANES)
    else:
        # Common case: free (bitcast) reshape — zero extra HBM traffic.
        o2 = o_flat.reshape(rows, _LANES)
        t2 = t_flat.reshape(rows, _LANES)

    partials = _mse_partial_sums(
        o2, t2, tm=tm, num_shards=num_shards, tiles_per_shard=tiles_per_shard
    )
    total_sum = jnp.sum(partials)

    # Row remainder not covered by whole tiles (< num_shards * tm rows):
    # fused XLA slice+sub+square+reduce, no materialized copy.
    if covered_rows < rows:
        dr = o2[covered_rows:].astype(jnp.float32) - t2[covered_rows:].astype(jnp.float32)
        total_sum = total_sum + jnp.sum(dr * dr)
    if tail:
        dt = o_flat[main:].astype(jnp.float32) - t_flat[main:].astype(jnp.float32)
        total_sum = total_sum + jnp.sum(dt * dt)

    return total_sum / total


if __name__ == "__main__":
    key = jax.random.PRNGKey(0)
    k1, k2, k3, k4, k5, k6, k7, k8 = jax.random.split(key, 8)

    # 1) Small NCHW f32 case (2048 elements = 16 lane-rows); force the Pallas
    #    path so the kernel is exercised despite the small-input fast path.
    x_shape = (2, 4, 16, 16)
    outputs = jax.random.normal(k1, x_shape, dtype=jnp.float32)
    targets = jax.random.normal(k2, x_shape, dtype=jnp.float32)
    loss = mse_loss(outputs, targets, use_pallas=True)
    jax.block_until_ready(loss)
    ref = jnp.mean((outputs - targets) ** 2)
    assert jnp.allclose(loss, ref, rtol=1e-5, atol=1e-6), (loss, ref)

    # 2) Element count not a multiple of 128 and tiny: XLA fast path.
    y_shape = (2, 3, 7, 5)  # 210 elements
    o_odd = jax.random.normal(k3, y_shape, dtype=jnp.float32)
    t_odd = jax.random.normal(k4, y_shape, dtype=jnp.float32)
    loss_odd = mse_loss(o_odd, t_odd)
    jax.block_until_ready(loss_odd)
    ref_odd = jnp.mean((o_odd - t_odd) ** 2)
    assert jnp.allclose(loss_odd, ref_odd, rtol=1e-5, atol=1e-6), (loss_odd, ref_odd)

    # 3) Larger case exercising the in-kernel chunked fori_loop accumulation
    #    and the XLA row-remainder path (780 rows, not a multiple of the tile).
    z_shape = (3, 8, 32, 130)  # 99840 elements = 780 * 128
    o_big = jax.random.normal(k5, z_shape, dtype=jnp.float32)
    t_big = jax.random.normal(k6, z_shape, dtype=jnp.float32)
    loss_big = mse_loss(o_big, t_big, use_pallas=True)
    jax.block_until_ready(loss_big)
    ref_big = jnp.mean((o_big - t_big) ** 2)
    assert jnp.allclose(loss_big, ref_big, rtol=1e-5, atol=1e-6), (loss_big, ref_big)

    # 4) bf16 inputs: DMA stays bf16 (block rows respect the (16,128) packing),
    #    f32 accumulation happens in-kernel.
    w_shape = (4, 16, 16, 16)  # 16384 elements = 128 * 128
    o_bf = jax.random.normal(k7, w_shape, dtype=jnp.bfloat16)
    t_bf = jax.random.normal(k8, w_shape, dtype=jnp.bfloat16)
    loss_bf = mse_loss(o_bf, t_bf, use_pallas=True)
    jax.block_until_ready(loss_bf)
    ref_bf = jnp.mean((o_bf.astype(jnp.float32) - t_bf.astype(jnp.float32)) ** 2)
    assert jnp.allclose(loss_bf, ref_bf, rtol=1e-4, atol=1e-5), (loss_bf, ref_bf)

    print("KERNEL_OK")
</pallas_src>

<mosaic_0001>
module attributes {stable_mosaic.version = 11 : i64} {
  func.func @_mse_partial_kernel(%arg0: i32, %arg1: i32, %arg2: memref<16x128xf32, #tpu.memory_space<vmem>>, %arg3: memref<16x128xf32, #tpu.memory_space<vmem>>, %arg4: memref<8x128xf32, #tpu.memory_space<vmem>>) attributes {dimension_semantics = [#tpu.dimension_semantics<parallel>, #tpu.dimension_semantics<arbitrary>], iteration_bounds = array<i64: 1, 1>, scalar_prefetch = 0 : i64, scratch_operands = 0 : i64, tpu.core_type = #tpu.core_type<tc>, window_params = [{transform_indices = @transform_0, window_bounds = array<i64: 16, 128>}, {transform_indices = @transform_1, window_bounds = array<i64: 16, 128>}, {transform_indices = @transform_2, window_bounds = array<i64: 8, 128>}]} {
    %c0_i32 = arith.constant 0 : i32
    %0 = arith.cmpi eq, %arg1, %c0_i32 : i32
    %1 = arith.extui %0 : i1 to i32
    %c0_i32_0 = arith.constant 0 : i32
    %2 = arith.cmpi ne, %1, %c0_i32_0 : i32
    scf.if %2 {
      %cst_8 = arith.constant 0.000000e+00 : f32
      %12 = vector.broadcast %cst_8 : f32 to vector<8x128xf32>
      %c0_9 = arith.constant 0 : index
      %c0_10 = arith.constant 0 : index
      %13 = vector.load %arg4[%c0_9, %c0_10] : memref<8x128xf32, #tpu.memory_space<vmem>>, vector<8x128xf32>
      tpu.vector_store %arg4[%c0_9, %c0_10], %12 {strides = array<i32>} : memref<8x128xf32, #tpu.memory_space<vmem>>, vector<8x128xf32>,
    } else {
    }
    %c0 = arith.constant 0 : index
    %c0_1 = arith.constant 0 : index
    %3 = vector.load %arg2[%c0, %c0_1] : memref<16x128xf32, #tpu.memory_space<vmem>>, vector<16x128xf32>
    %c0_2 = arith.constant 0 : index
    %c0_3 = arith.constant 0 : index
    %4 = vector.load %arg3[%c0_2, %c0_3] : memref<16x128xf32, #tpu.memory_space<vmem>>, vector<16x128xf32>
    %5 = arith.subf %3, %4 : vector<16x128xf32>
    %6 = arith.mulf %5, %5 : vector<16x128xf32>
    %7 = vector.shape_cast %6 : vector<16x128xf32> to vector<2x8x128xf32>
    %cst = arith.constant dense<0.000000e+00> : vector<8x128xf32>
    %8 = vector.multi_reduction <add>, %7, %cst [0] : vector<2x8x128xf32> to vector<8x128xf32>
    %c0_4 = arith.constant 0 : index
    %c0_5 = arith.constant 0 : index
    %9 = vector.load %arg4[%c0_4, %c0_5] : memref<8x128xf32, #tpu.memory_space<vmem>>, vector<8x128xf32>
    %10 = arith.addf %9, %8 : vector<8x128xf32>
    %c0_6 = arith.constant 0 : index
    %c0_7 = arith.constant 0 : index
    %11 = vector.load %arg4[%c0_6, %c0_7] : memref<8x128xf32, #tpu.memory_space<vmem>>, vector<8x128xf32>
    tpu.vector_store %arg4[%c0_6, %c0_7], %10 {strides = array<i32>} : memref<8x128xf32, #tpu.memory_space<vmem>>, vector<8x128xf32>,
    return
  }
  func.func @transform_0(%arg0: i32, %arg1: i32) -> (i32, i32) {
    %c1_i32 = arith.constant 1 : i32
    %0 = arith.muli %arg0, %c1_i32 : i32
    %1 = arith.addi %0, %arg1 : i32
    %c0_i32 = arith.constant 0 : i32
    %c0_i32_0 = arith.constant 0 : i32
    return %1, %c0_i32 : i32, i32
  }
  func.func @transform_1(%arg0: i32, %arg1: i32) -> (i32, i32) {
    %c1_i32 = arith.constant 1 : i32
    %0 = arith.muli %arg0, %c1_i32 : i32
    %1 = arith.addi %0, %arg1 : i32
    %c0_i32 = arith.constant 0 : i32
    %c0_i32_0 = arith.constant 0 : i32
    return %1, %c0_i32 : i32, i32
  }
  func.func @transform_2(%arg0: i32, %arg1: i32) -> (i32, i32) {
    %c0_i32 = arith.constant 0 : i32
    %c0_i32_0 = arith.constant 0 : i32
    return %arg0, %c0_i32 : i32, i32
  }
}

</mosaic_0001>

<llo_original>
// kernel: tpu_custom_call.1
$region0: #{tpu_custom_call.1}
  #allocation0 [shape = 'u32[]', space=smem, size = 0x4, offset = 0x4, fixed_abs, tag = 'smem constant byte address 0x4 - core index']
  #allocation1 [shape = 'u32[144,128]{1,0:T(1,128)}', space=vmem, size = 0x12000, scoped, tag = 'internal scratch']
  %s0 = inlined_call_operand.hbm [shape: f32[16,128], index: 0, kind: input, shape index: {}]
  %s1 = inlined_call_operand.hbm [shape: f32[16,128], index: 1, kind: input, shape index: {}]
  %s2 = inlined_call_operand.hbm [shape: f32[8,128], index: 2, kind: output, shape index: {}]
  %s3 = sld [smem:[#allocation0]]
  $region30: #{tpu_custom_call.1} parent=0
    _
  %s5 = ssub.s32 1, %s3
  %s6 = scalar_select 0, %s5, %s3
  $region1: #{tpu_custom_call.1} parent=0
    #allocation2 [shape = 'u8[8192]{0}', space=vmem, size = 0x2000, scoped, tag = 'input window, operand 0, single buffered']
    #allocation3 [shape = 's32[1]{0}', space=sflag, size = 0x4, scoped, tag = 'scoped memory for tpu_custom_call.1']
    #allocation4 [shape = 's32[1]{0}', space=sflag, size = 0x4, scoped, tag = 'scoped memory for tpu_custom_call.1']
    #allocation5 [shape = 'u8[8192]{0}', space=vmem, size = 0x2000, scoped, tag = 'input window, operand 1, single buffered']
    #allocation6 [shape = 's32[1]{0}', space=sflag, size = 0x4, scoped, tag = 'scoped memory for tpu_custom_call.1']
    #allocation7 [shape = 'u8[4096]{0}', space=vmem, size = 0x1000, scoped, tag = 'output window, operand 0, single buffered']
    %7 = vsyncpa [#allocation3], 0
    %8 = vsyncpa [#allocation6], 0
    %9 = vsyncpa [#allocation4], 0
    // Predicated region
    $region2: #{tpu_custom_call.1} parent=1 // pred_check
      _
    $region3: #{tpu_custom_call.1} parent=1 // pred_check_branch
      %11 = sbr.rel (0) target = $region5
    $region4: #{tpu_custom_call.1} parent=1 // pred_region
      %s12 = sadd.s32 0, 0
      %s13 = smul.u32 2, %s12
      %s15 = ssub.s32 256, 256
      %16 = vsyncadd [#allocation3], %s15
      %s17 = smul.addr %s13, 128
      %s18 = scalar_lea.hbm %s0, %s17
      %s19 = sshll.u32 [#allocation2], 4
      %s20 = int_to_ptr.vmem [resolvable:$true] %s19
      %25 = dma.hbm_to_vmem [thread:$0]  %s18, 256, %s20, [#allocation3], 128, 128, 8
    $region5: #{tpu_custom_call.1} parent=1 // pred_fallthru
      _
    // Predicated region
    $region6: #{tpu_custom_call.1} parent=1 // pred_check
      _
    $region7: #{tpu_custom_call.1} parent=1 // pred_check_branch
      %27 = sbr.rel (0) target = $region9
    $region8: #{tpu_custom_call.1} parent=1 // pred_region
      %s28 = sadd.s32 0, 0
      %s29 = smul.u32 2, %s28
      %s31 = ssub.s32 256, 256
      %32 = vsyncadd [#allocation6], %s31
      %s33 = smul.addr %s29, 128
      %s34 = scalar_lea.hbm %s1, %s33
      %s35 = sshll.u32 [#allocation5], 4
      %s36 = int_to_ptr.vmem [resolvable:$true] %s35
      %41 = dma.hbm_to_vmem [thread:$0]  %s34, 256, %s36, [#allocation6], 128, 128, 8
    $region9: #{tpu_custom_call.1} parent=1 // pred_fallthru
      _
    // Predicated region
    $region10: #{tpu_custom_call.1} parent=1 // pred_check
      _
    $region11: #{tpu_custom_call.1} parent=1 // pred_check_branch
      %43 = sbr.rel (0) target = $region13
    $region12: #{tpu_custom_call.1} parent=1 // pred_region
      %44 = dma.done [#allocation3], 256
    $region13: #{tpu_custom_call.1} parent=1 // pred_fallthru
      _
    // Predicated region
    $region14: #{tpu_custom_call.1} parent=1 // pred_check
      _
    $region15: #{tpu_custom_call.1} parent=1 // pred_check_branch
      %46 = sbr.rel (0) target = $region17
    $region16: #{tpu_custom_call.1} parent=1 // pred_region
      %47 = dma.done [#allocation6], 256
    $region17: #{tpu_custom_call.1} parent=1 // pred_fallthru
      _
    %s48 = sadd.s32 0, 0
    %s49 = smul.u32 2, %s48
    %s50 = sadd.s32 0, 0
    %s51 = smul.u32 2, %s50
    %p52 = scmp.eq.s32.totalorder 0, 0
    // Predicated region
    $region18: #{tpu_custom_call.1} parent=1 // pred_check
      %p53 = pneg %p52
    $region19: #{tpu_custom_call.1} parent=1 // pred_check_branch
      %55 = sbr.rel (%p53) target = $region21
    $region20: #{tpu_custom_call.1} parent=1 // pred_region
      %56 = vst [vmem:[#allocation7] sm:$0xff] 0.0
    $region21: #{tpu_custom_call.1} parent=1 // pred_fallthru
      _
    %v57 = vld [vmem:[#allocation2] sm:$0xff]
    %v58 = vld [vmem:[#allocation2 + $0x8] sm:$0xff]
    %v59 = vld [vmem:[#allocation5] sm:$0xff]
    %v60 = vld [vmem:[#allocation5 + $0x8] sm:$0xff]
    %v61 = vsub.f32 %v57, %v59
    %v62 = vsub.f32 %v58, %v60
    %v63 = vmul.f32 %v61, %v61
    %v64 = vmul.f32 %v62, %v62
    %v65 = vadd.f32 %v63, %v64
    %v66 = vld [vmem:[#allocation7] sm:$0xff]
    %v67 = vadd.f32 %v66, %v65
    %68 = vst [vmem:[#allocation7] sm:$0xff] %v67
    // Predicated region
    $region22: #{tpu_custom_call.1} parent=1 // pred_check
      _
    $region23: #{tpu_custom_call.1} parent=1 // pred_check_branch
      %70 = sbr.rel (0) target = $region25
    $region24: #{tpu_custom_call.1} parent=1 // pred_region
      %s72 = ssub.s32 128, 128
      %73 = vsyncadd [#allocation4], %s72
      %s75 = sshll.u32 [#allocation7], 4
      %s76 = int_to_ptr.vmem [resolvable:$true] %s75
      %78 = dma.vmem_to_hbm [thread:$0]  %s76, 128, %s2, [#allocation4]
    $region25: #{tpu_custom_call.1} parent=1 // pred_fallthru
      _
    // Predicated region
    $region26: #{tpu_custom_call.1} parent=1 // pred_check
      _
    $region27: #{tpu_custom_call.1} parent=1 // pred_check_branch
      %80 = sbr.rel (0) target = $region29
    $region28: #{tpu_custom_call.1} parent=1 // pred_region
      %81 = dma.done [#allocation4], 128
    $region29: #{tpu_custom_call.1} parent=1 // pred_fallthru
      _
    %82 = vsyncpa [#allocation3], 1
    %83 = vsyncpa [#allocation6], 1
    %84 = vsyncpa [#allocation4], 1

</llo_original>
